<compile_context>
chip_gen: v6e
topology: v6e:2x2x1
jax: 0.10.0
libtpu: 0.0.40
codegen_flags: <defaults>
</compile_context>

<pallas_src>
import functools

import jax
import jax.numpy as jnp
from jax import lax
from jax.experimental import pallas as pl
from jax.experimental.pallas import tpu as pltpu


# ---------------------------------------------------------------------------
# Kernel 1: fused LSTMCell gate + lhs * h'   (runs once, VMEM-resident)
# ---------------------------------------------------------------------------
def _kdgene_gate_kernel(zin_ref, lhs_ref, wg_ref, bias_ref, out_ref, *, edim):
    # zin = [rel, lhs] : (B, rdim+edim);  wg = [W_ih3.T ; W_hh3.T] : (rdim+edim, 3E)
    gates = (jnp.dot(zin_ref[...], wg_ref[...],
                     preferred_element_type=jnp.float32)
             + bias_ref[...])                               # (B, 3E)
    E = edim
    i_g = jax.nn.sigmoid(gates[:, 0:E])
    g_g = jnp.tanh(gates[:, E:2 * E])
    o_g = jax.nn.sigmoid(gates[:, 2 * E:3 * E])
    rel_update = o_g * jnp.tanh(i_g * g_g)                  # f*c term vanishes (c == 0)
    out_ref[...] = (lhs_ref[...] * rel_update).astype(out_ref.dtype)


def kdgene_queries_pallas(lhs, rel, w_gate_t, bias3, out_dtype):
    """output = lhs * LSTMCell(rel, (lhs, 0)).h   -> (B, edim) in out_dtype."""
    B, edim = lhs.shape
    zin = jnp.concatenate([rel, lhs], axis=1)               # (B, rdim+edim)
    vmem = pl.BlockSpec(memory_space=pltpu.MemorySpace.VMEM)
    return pl.pallas_call(
        functools.partial(_kdgene_gate_kernel, edim=edim),
        out_shape=jax.ShapeDtypeStruct((B, edim), out_dtype),
        in_specs=[vmem] * 4,
        out_specs=vmem,
    )(zin, lhs, w_gate_t, bias3)


# ---------------------------------------------------------------------------
# Kernel 2: streamed score matmul  pred = q @ rhs_weight.T
#           weights pre-transposed to (edim, N); gridded over N
# ---------------------------------------------------------------------------
def _kdgene_score_kernel(q_ref, rhswt_ref, pred_ref):
    pred_ref[...] = jnp.dot(q_ref[...], rhswt_ref[...],
                            preferred_element_type=jnp.float32)


def _pick_score_tile(n_cols, edim, wbytes, *, target_tile_bytes=3 << 20,
                     min_steps=4):
    """Weight tile width: ~2-4 MiB per step, lane multiple, >= min_steps grid steps."""
    tn = max(128, ((target_tile_bytes // (edim * wbytes)) // 128) * 128)
    # Keep at least `min_steps` grid steps so BlockSpec pipelining engages and
    # v7x's two TensorCores actually split the (parallel) n_rhs axis.
    cap = max(128, ((pl.cdiv(n_cols, min_steps) + 127) // 128) * 128)
    return int(min(tn, cap, n_cols))


def kdgene_score_pallas(queries, rhs_w_t, *, tn=None):
    """pred = queries @ rhs_w_t  with rhs_w_t = (edim, n_cols) pre-transposed."""
    B, edim = queries.shape
    n_cols = rhs_w_t.shape[1]
    wbytes = jnp.dtype(rhs_w_t.dtype).itemsize
    if tn is None:
        tn = _pick_score_tile(n_cols, edim, wbytes)
    tn = int(min(tn, n_cols))
    grid = (pl.cdiv(n_cols, tn),)

    # v7x-aware VMEM budget (64 MiB physical / 32 MiB scoped default):
    # double-buffered weight tile + double-buffered pred tile + resident queries.
    qbytes = jnp.dtype(queries.dtype).itemsize
    need = 2 * tn * edim * wbytes + 2 * B * tn * 4 + B * edim * qbytes
    vmem_limit = int(min(48 << 20, max(2 * need + (4 << 20), 16 << 20)))

    return pl.pallas_call(
        _kdgene_score_kernel,
        out_shape=jax.ShapeDtypeStruct((B, n_cols), jnp.float32),
        grid=grid,
        in_specs=[
            pl.BlockSpec((B, edim), lambda j: (0, 0)),     # resident queries
            pl.BlockSpec((edim, tn), lambda j: (0, j)),    # streamed (K, TN) weights
        ],
        out_specs=pl.BlockSpec((B, tn), lambda j: (0, j)),  # lane-dense writes
        compiler_params=pltpu.CompilerParams(
            dimension_semantics=("parallel",),              # v7x: 2 TCs split n_rhs
            vmem_limit_bytes=vmem_limit),
    )(queries, rhs_w_t)


# ---------------------------------------------------------------------------
# Param preparation (done ONCE at setup, not per forward call):
#  - strip the dead forget-gate rows (i, g, o kept),
#  - fuse + pre-transpose the small gate weights into one (rdim+edim, 3E) matrix,
#  - pre-transpose + pad + cast the rhs weights for the streamed score matmul.
# ---------------------------------------------------------------------------
def kdgene_prepare_params(lhs_w, rel_w, rhs_w, w_ih, w_hh, b_ih, b_hh,
                          score_dtype=jnp.bfloat16):
    E = lhs_w.shape[1]

    def keep_igo(w):  # PyTorch LSTMCell row order is (i, f, g, o); f is dead (c=0)
        return jnp.concatenate([w[0:E], w[2 * E:4 * E]], axis=0)

    # Fused gate weight: [rel, lhs] @ w_gate_t == rel @ W_ih3.T + lhs @ W_hh3.T
    w_gate_t = jnp.concatenate([keep_igo(w_ih).T, keep_igo(w_hh).T], axis=0)
    bias3 = (keep_igo(b_ih) + keep_igo(b_hh)).reshape(1, 3 * E)

    # Score weights: transposed once to (edim, n_rhs), padded to a lane multiple,
    # cast once to the streaming dtype (no per-call transpose/cast HBM traffic).
    n_rhs = rhs_w.shape[0]
    n_pad = (-n_rhs) % 128
    rhs_w_t = rhs_w.T.astype(score_dtype)                   # (E, n_rhs)
    if n_pad:
        rhs_w_t = jnp.pad(rhs_w_t, ((0, 0), (0, n_pad)))

    return dict(
        lhs_w=lhs_w, rel_w=rel_w, rhs_w=rhs_w,
        w_gate_t=w_gate_t,                # (rdim+edim, 3E)
        bias3=bias3,                      # (1, 3E)
        rhs_w_score_t=rhs_w_t,            # (edim, n_rhs padded to 128)
    )


# ---------------------------------------------------------------------------
# Full forward (embedding gathers are plain-JAX glue).
# ---------------------------------------------------------------------------
def kdgene_forward(x, params, *, tn=None):
    lhs = params["lhs_w"][x[:, 0]]        # (B, edim)
    rel = params["rel_w"][x[:, 1]]        # (B, rdim)
    rhs = params["rhs_w"][x[:, 2]]        # (B, edim)

    # Pad the batch up to a sublane multiple (8) so all tiles stay dense.
    B = lhs.shape[0]
    pad = (-B) % 8
    lhs_p = jnp.pad(lhs, ((0, pad), (0, 0))) if pad else lhs
    rel_p = jnp.pad(rel, ((0, pad), (0, 0))) if pad else rel

    q = kdgene_queries_pallas(lhs_p, rel_p, params["w_gate_t"], params["bias3"],
                              out_dtype=params["rhs_w_score_t"].dtype)
    pred = kdgene_score_pallas(q, params["rhs_w_score_t"], tn=tn)
    pred = pred[:B, :params["rhs_w"].shape[0]]   # trim batch + lane padding
    return pred, (lhs, rel, rhs)


# Pure-JAX reference (full-precision matmuls) for correctness checking.
def kdgene_forward_ref(x, raw):
    lhs = raw["lhs_w"][x[:, 0]]
    rel = raw["rel_w"][x[:, 1]]
    rhs = raw["rhs_w"][x[:, 2]]
    E = lhs.shape[1]
    hi = lax.Precision.HIGHEST
    gates = (jnp.dot(rel, raw["w_ih"].T, precision=hi) + raw["b_ih"]
             + jnp.dot(lhs, raw["w_hh"].T, precision=hi) + raw["b_hh"])
    i = jax.nn.sigmoid(gates[:, 0:E])
    g = jnp.tanh(gates[:, 2 * E:3 * E])
    o = jax.nn.sigmoid(gates[:, 3 * E:4 * E])
    h = o * jnp.tanh(i * g)
    pred = jnp.dot(lhs * h, raw["rhs_w"].T, precision=hi)
    return pred, (lhs, rel, rhs)


if __name__ == "__main__":
    # Small, TPU-friendly shapes consistent with the module.
    sizes = (16, 8, 1024)       # (#lhs entities, #relations, #rhs entities)
    edim, rdim = 128, 128
    batch = 8
    init_size = 0.001

    key = jax.random.PRNGKey(0)
    k = jax.random.split(key, 8)

    lhs_w = jax.random.normal(k[0], (sizes[0], edim), jnp.float32) * init_size
    rel_w = jax.random.normal(k[1], (sizes[1], rdim), jnp.float32) * init_size
    rhs_w = jax.random.normal(k[2], (sizes[2], edim), jnp.float32) * init_size

    bound = 1.0 / jnp.sqrt(jnp.float32(edim))
    w_ih = jax.random.uniform(k[3], (4 * edim, rdim), jnp.float32, -bound, bound)
    w_hh = jax.random.uniform(k[4], (4 * edim, edim), jnp.float32, -bound, bound)
    b_ih = jax.random.uniform(k[5], (4 * edim,), jnp.float32, -bound, bound)
    b_hh = jax.random.uniform(k[6], (4 * edim,), jnp.float32, -bound, bound)

    raw = dict(lhs_w=lhs_w, rel_w=rel_w, rhs_w=rhs_w,
               w_ih=w_ih, w_hh=w_hh, b_ih=b_ih, b_hh=b_hh)

    params_f32 = kdgene_prepare_params(lhs_w, rel_w, rhs_w, w_ih, w_hh, b_ih, b_hh,
                                       score_dtype=jnp.float32)
    params_bf16 = kdgene_prepare_params(lhs_w, rel_w, rhs_w, w_ih, w_hh, b_ih, b_hh,
                                        score_dtype=jnp.bfloat16)

    x = jnp.stack([
        jax.random.randint(k[7], (batch,), 0, sizes[0]),
        jax.random.randint(jax.random.fold_in(k[7], 1), (batch,), 0, sizes[1]),
        jax.random.randint(jax.random.fold_in(k[7], 2), (batch,), 0, sizes[2]),
    ], axis=1).astype(jnp.int32)

    # tn=None -> adaptive tile (at these shapes: 256-wide tiles, 4 grid steps).
    fwd = jax.jit(functools.partial(kdgene_forward, tn=None))

    pred_ref, (lhs_ref, rel_ref, rhs_ref) = kdgene_forward_ref(x, raw)
    ref_scale = float(jnp.max(jnp.abs(pred_ref))) + 1e-30

    # f32 weight-streaming path (tight relative-error check).
    pred_f32, (lhs_o, rel_o, rhs_o) = fwd(x, params_f32)
    pred_f32 = jax.block_until_ready(pred_f32)
    assert pred_f32.shape == (batch, sizes[2])
    rel_err_f32 = float(jnp.max(jnp.abs(pred_f32 - pred_ref))) / ref_scale
    assert rel_err_f32 < 3e-3, f"f32 path rel err {rel_err_f32}"
    assert jnp.allclose(lhs_o, lhs_ref) and jnp.allclose(rel_o, rel_ref) \
        and jnp.allclose(rhs_o, rhs_ref), "embedding factors mismatch"

    # bf16 weight-streaming path (review-recommended default; looser tolerance).
    pred_bf16, _ = fwd(x, params_bf16)
    pred_bf16 = jax.block_until_ready(pred_bf16)
    rel_err_bf16 = float(jnp.max(jnp.abs(pred_bf16 - pred_ref))) / ref_scale
    assert rel_err_bf16 < 5e-2, f"bf16 path rel err {rel_err_bf16}"

    print("KERNEL_OK")
</pallas_src>

<mosaic_0001>
module attributes {stable_mosaic.version = 11 : i64} {
  func.func @_kdgene_score_kernel(%arg0: i32, %arg1: memref<8x128xf32, #tpu.memory_space<vmem>>, %arg2: memref<128x256xf32, #tpu.memory_space<vmem>>, %arg3: memref<8x256xf32, #tpu.memory_space<vmem>>) attributes {dimension_semantics = [#tpu.dimension_semantics<parallel>], iteration_bounds = array<i64: 4>, scalar_prefetch = 0 : i64, scratch_operands = 0 : i64, tpu.core_type = #tpu.core_type<tc>, window_params = [{pipeline_mode = #tpu.pipeline_mode<synchronous>, transform_indices = @transform_0, window_bounds = array<i64: 8, 128>}, {transform_indices = @transform_1, window_bounds = array<i64: 128, 256>}, {transform_indices = @transform_2, window_bounds = array<i64: 8, 256>}]} {
    %c0 = arith.constant 0 : index
    %c0_0 = arith.constant 0 : index
    %0 = vector.load %arg1[%c0, %c0_0] : memref<8x128xf32, #tpu.memory_space<vmem>>, vector<8x128xf32>
    %c0_1 = arith.constant 0 : index
    %c0_2 = arith.constant 0 : index
    %1 = vector.load %arg2[%c0_1, %c0_2] : memref<128x256xf32, #tpu.memory_space<vmem>>, vector<128x256xf32>
    %cst = arith.constant dense<0.000000e+00> : vector<8x256xf32>
    %2 = tpu.matmul %0, %1, %cst {dimension_numbers = #tpu.dot_dimension_numbers<[1], [0], [0], [1], [0, 0, 1, 1], [], []>} : vector<8x128xf32>, vector<128x256xf32>, vector<8x256xf32> -> vector<8x256xf32>
    %c0_3 = arith.constant 0 : index
    %c0_4 = arith.constant 0 : index
    %3 = vector.load %arg3[%c0_3, %c0_4] : memref<8x256xf32, #tpu.memory_space<vmem>>, vector<8x256xf32>
    tpu.vector_store %arg3[%c0_3, %c0_4], %2 {strides = array<i32>} : memref<8x256xf32, #tpu.memory_space<vmem>>, vector<8x256xf32>,
    return
  }
  func.func @transform_0(%arg0: i32) -> (i32, i32) {
    %c0_i32 = arith.constant 0 : i32
    %c0_i32_0 = arith.constant 0 : i32
    %c0_i32_1 = arith.constant 0 : i32
    return %c0_i32, %c0_i32_0 : i32, i32
  }
  func.func @transform_1(%arg0: i32) -> (i32, i32) {
    %c0_i32 = arith.constant 0 : i32
    %c0_i32_0 = arith.constant 0 : i32
    return %c0_i32, %arg0 : i32, i32
  }
  func.func @transform_2(%arg0: i32) -> (i32, i32) {
    %c0_i32 = arith.constant 0 : i32
    %c0_i32_0 = arith.constant 0 : i32
    return %c0_i32, %arg0 : i32, i32
  }
}

module attributes {stable_mosaic.version = 11 : i64} {
  func.func @_kdgene_gate_kernel(%arg0: memref<8x256xf32, #tpu.memory_space<vmem>>, %arg1: memref<8x128xf32, #tpu.memory_space<vmem>>, %arg2: memref<256x384xf32, #tpu.memory_space<vmem>>, %arg3: memref<1x384xf32, #tpu.memory_space<vmem>>, %arg4: memref<8x128xf32, #tpu.memory_space<vmem>>) attributes {dimension_semantics = [], scalar_prefetch = 0 : i64, scratch_operands = 0 : i64, tpu.core_type = #tpu.core_type<tc>} {
    %c0 = arith.constant 0 : index
    %c0_0 = arith.constant 0 : index
    %0 = vector.load %arg0[%c0, %c0_0] : memref<8x256xf32, #tpu.memory_space<vmem>>, vector<8x256xf32>
    %c0_1 = arith.constant 0 : index
    %c0_2 = arith.constant 0 : index
    %1 = vector.load %arg2[%c0_1, %c0_2] : memref<256x384xf32, #tpu.memory_space<vmem>>, vector<256x384xf32>
    %cst = arith.constant dense<0.000000e+00> : vector<8x384xf32>
    %2 = tpu.matmul %0, %1, %cst {dimension_numbers = #tpu.dot_dimension_numbers<[1], [0], [0], [1], [0, 0, 1, 1], [], []>} : vector<8x256xf32>, vector<256x384xf32>, vector<8x384xf32> -> vector<8x384xf32>
    %c0_3 = arith.constant 0 : index
    %c0_4 = arith.constant 0 : index
    %3 = vector.load %arg3[%c0_3, %c0_4] : memref<1x384xf32, #tpu.memory_space<vmem>>, vector<1x384xf32>
    %4 = vector.broadcast %3 : vector<1x384xf32> to vector<8x384xf32>
    %5 = arith.addf %2, %4 : vector<8x384xf32>
    %6 = vector.extract_strided_slice %5 {offsets = [0, 0], sizes = [8, 128], strides = [1, 1]} : vector<8x384xf32> to vector<8x128xf32>
    %7 = arith.negf %6 : vector<8x128xf32>
    %8 = math.exp %7 : vector<8x128xf32>
    %cst_5 = arith.constant 1.000000e+00 : f32
    %9 = vector.broadcast %cst_5 : f32 to vector<8x128xf32>
    %10 = arith.addf %9, %8 : vector<8x128xf32>
    %11 = arith.divf %9, %10 : vector<8x128xf32>
    %12 = vector.extract_strided_slice %5 {offsets = [0, 128], sizes = [8, 128], strides = [1, 1]} : vector<8x384xf32> to vector<8x128xf32>
    %13 = math.tanh %12 : vector<8x128xf32>
    %14 = vector.extract_strided_slice %5 {offsets = [0, 256], sizes = [8, 128], strides = [1, 1]} : vector<8x384xf32> to vector<8x128xf32>
    %15 = arith.negf %14 : vector<8x128xf32>
    %16 = math.exp %15 : vector<8x128xf32>
    %cst_6 = arith.constant 1.000000e+00 : f32
    %17 = vector.broadcast %cst_6 : f32 to vector<8x128xf32>
    %18 = arith.addf %17, %16 : vector<8x128xf32>
    %19 = arith.divf %17, %18 : vector<8x128xf32>
    %20 = arith.mulf %11, %13 : vector<8x128xf32>
    %21 = math.tanh %20 : vector<8x128xf32>
    %22 = arith.mulf %19, %21 : vector<8x128xf32>
    %c0_7 = arith.constant 0 : index
    %c0_8 = arith.constant 0 : index
    %23 = vector.load %arg1[%c0_7, %c0_8] : memref<8x128xf32, #tpu.memory_space<vmem>>, vector<8x128xf32>
    %24 = arith.mulf %23, %22 : vector<8x128xf32>
    %c0_9 = arith.constant 0 : index
    %c0_10 = arith.constant 0 : index
    %25 = vector.load %arg4[%c0_9, %c0_10] : memref<8x128xf32, #tpu.memory_space<vmem>>, vector<8x128xf32>
    tpu.vector_store %arg4[%c0_9, %c0_10], %24 {strides = array<i32>} : memref<8x128xf32, #tpu.memory_space<vmem>>, vector<8x128xf32>,
    return
  }
}

</mosaic_0001>

<llo_original>
// kernel: kdgene_forward.3
$region0: #{kdgene_forward.3}
  #allocation0 [shape = 'u32[]', space=smem, size = 0x4, offset = 0x4, fixed_abs, tag = 'smem constant byte address 0x4 - core index']
  #allocation1 [shape = 'u32[144,128]{1,0:T(1,128)}', space=vmem, size = 0x12000, scoped, tag = 'internal scratch']
  %s0 = inlined_call_operand.vmem [shape: f32[8,128], index: 0, kind: input, shape index: {}]
  %s1 = inlined_call_operand.vmem [shape: f32[128,1024], index: 1, kind: input, shape index: {}]
  %s2 = inlined_call_operand.hbm [shape: f32[8,1024], index: 2, kind: output, shape index: {}]
  %s3 = sld [smem:[#allocation0]]
  $region64: #{kdgene_forward.3} parent=0
    _
  %s5 = ssub.s32 1, %s3
  %s6 = scalar_select 0, %s5, %s3
  $region1: #{kdgene_forward.3} parent=0
    #allocation2 [shape = 'u8[262144]{0}', space=vmem, size = 0x40000, scoped, tag = 'input window, operand 1']
    #allocation3 [shape = 'u8[16384]{0}', space=vmem, size = 0x4000, scoped, tag = 'output window, operand 0']
    #allocation4 [shape = 's32[2]{0}', space=sflag, size = 0x8, scoped, tag = 'scoped memory for kdgene_forward.3']
    %7 = vsyncpa [#allocation4], 0
    %s8 = scalar_lea.sflag [#allocation4], 1
    %9 = vsyncpa %s8, 0
    loop: start=0, step=1, limit=6
    $region2: #{kdgene_forward.3} parent=1 // loop_pre_header
      _
    $region3: #{kdgene_forward.3} parent=1 // loop_header
      %s11 = sphi 0, %s15
      %p12 = scmp.ge.s32.totalorder %s11, 6
      %s19 = sphi 0, %s19
      %s21 = sphi 0, %s19
      %s22 = sphi 0, %s21
      %s36 = sphi 0, %s22
      %s42 = sphi 0, %s44
      %s45 = sphi 0, %s42
      %s46 = sphi 0, %s45
      %s62 = sphi 0, %s46
      %s68 = sphi 0, %s70
      %s71 = sphi 0, %s68
      %s72 = sphi 0, %s71
      %s88 = sphi 0, %s72
    $region4: #{kdgene_forward.3} parent=1 // loop_header_branch
      %14 = sbr.rel (%p12) target = $region8
    $region5: #{kdgene_forward.3} parent=1 // loop_body
      %s16 = ssub.s32 %s11, 1
      %s17 = ssub.s32 %s11, 2
      %s18 = sadd.s32 %s11, 1
      %s20 = sadd.s32 %s19, 1
      %p23 = scmp.eq.s32.totalorder %s11, 3
      %p24 = scmp.ne.s32.totalorder %s19, %s21
      %p25 = scmp.eq.s32.totalorder %s11, 0
      %p26 = por %p24, %p25
      %p27 = scmp.ne.s32.totalorder %s19, %s21
      %p28 = scmp.eq.s32.totalorder %s16, 3
      %p29 = por %p27, %p28
      %p30 = scmp.ne.s32.totalorder %s21, %s22
      %p31 = scmp.eq.s32.totalorder %s16, 0
      %p32 = por %p30, %p31
      %p33 = scmp.ne.s32.totalorder %s21, %s22
      %p34 = scmp.eq.s32.totalorder %s17, 3
      %p35 = por %p33, %p34
      %p37 = scmp.ne.s32.totalorder %s22, %s36
      %p38 = scmp.eq.s32.totalorder %s17, 0
      %p39 = por %p37, %p38
      %s40 = ssub.s32 %s11, %s18
      %p41 = scmp.eq.s32.totalorder %s40, 0
      %s43 = sadd.s32 %s42, 1
      %s44 = scalar_select %p41, %s42, %s43
      %p47 = pneg %p41
      %p48 = scmp.eq.s32.totalorder %s11, 3
      %p49 = por %p47, %p48
      %p50 = scmp.ne.s32.totalorder %s42, %s45
      %p51 = scmp.eq.s32.totalorder %s11, 0
      %p52 = por %p50, %p51
      %p53 = scmp.ne.s32.totalorder %s42, %s45
      %p54 = scmp.eq.s32.totalorder %s16, 3
      %p55 = por %p53, %p54
      %p56 = scmp.ne.s32.totalorder %s45, %s46
      %p57 = scmp.eq.s32.totalorder %s16, 0
      %p58 = por %p56, %p57
      %p59 = scmp.ne.s32.totalorder %s45, %s46
      %p60 = scmp.eq.s32.totalorder %s17, 3
      %p61 = por %p59, %p60
      %p63 = scmp.ne.s32.totalorder %s46, %s62
      %p64 = scmp.eq.s32.totalorder %s17, 0
      %p65 = por %p63, %p64
      %s66 = ssub.s32 %s11, %s18
      %p67 = scmp.eq.s32.totalorder %s66, 0
      %s69 = sadd.s32 %s68, 1
      %s70 = scalar_select %p67, %s68, %s69
      %p73 = pneg %p67
      %p74 = scmp.eq.s32.totalorder %s11, 3
      %p75 = por %p73, %p74
      %p76 = scmp.ne.s32.totalorder %s68, %s71
      %p77 = scmp.eq.s32.totalorder %s11, 0
      %p78 = por %p76, %p77
      %p79 = scmp.ne.s32.totalorder %s68, %s71
      %p80 = scmp.eq.s32.totalorder %s16, 3
      %p81 = por %p79, %p80
      %p82 = scmp.ne.s32.totalorder %s71, %s72
      %p83 = scmp.eq.s32.totalorder %s16, 0
      %p84 = por %p82, %p83
      %p85 = scmp.ne.s32.totalorder %s71, %s72
      %p86 = scmp.eq.s32.totalorder %s17, 3
      %p87 = por %p85, %p86
      %p89 = scmp.ne.s32.totalorder %s72, %s88
      %p90 = scmp.eq.s32.totalorder %s17, 0
      %p91 = por %p89, %p90
      %p92 = scmp.le.s32.totalorder 1, %s11
      %p93 = scmp.lt.s32.totalorder %s11, 5
      %p94 = pnand %p92, %p93
      %p95 = pneg %p94
      // Predicated region
      $region9: #{kdgene_forward.3} parent=5 // pred_check
        _
      $region10: #{kdgene_forward.3} parent=5 // pred_check_branch
        %97 = sbr.rel (%p94) target = $region12
      $region11: #{kdgene_forward.3} parent=5 // pred_region
        %s98 = ssub.s32 %s11, 1
        // Predicated region
        $region13: #{kdgene_forward.3} parent=11 // pred_check
          %p99 = pneg %p32
        $region14: #{kdgene_forward.3} parent=11 // pred_check_branch
          %101 = sbr.rel (%p99) target = $region16
        $region15: #{kdgene_forward.3} parent=11 // pred_region
          _
        $region16: #{kdgene_forward.3} parent=11 // pred_fallthru
          _
      $region12: #{kdgene_forward.3} parent=5 // pred_fallthru
        _
      %p102 = scmp.lt.s32.totalorder %s11, 4
      // Predicated region
      $region17: #{kdgene_forward.3} parent=5 // pred_check
        %p103 = pneg %p102
      $region18: #{kdgene_forward.3} parent=5 // pred_check_branch
        %105 = sbr.rel (%p103) target = $region20
      $region19: #{kdgene_forward.3} parent=5 // pred_region
        // Predicated region
        $region21: #{kdgene_forward.3} parent=19 // pred_check
          %p106 = pneg %p52
        $region22: #{kdgene_forward.3} parent=19 // pred_check_branch
          %108 = sbr.rel (%p106) target = $region24
        $region23: #{kdgene_forward.3} parent=19 // pred_region
          %s109 = sand.u32 %s42, 1
          %s110 = sand.u32 %s42, 1
          %s111 = smul.addr %s110, 256
          %s112 = scalar_lea.vmem [#allocation2], %s111
          %s113 = smul.u32 2, %s11
          %s114 = smul.addr %s113, 8
          %s115 = scalar_lea.vmem %s1, %s114
          // Predicated region
          $region25: #{kdgene_forward.3} parent=23 // pred_check
            _
          $region26: #{kdgene_forward.3} parent=23 // pred_check_branch
            %117 = sbr.rel (0) target = $region28
          $region27: #{kdgene_forward.3} parent=23 // pred_region
            // Predicated region
            $region29: #{kdgene_forward.3} parent=27 // pred_check
              _
            $region30: #{kdgene_forward.3} parent=27 // pred_check_branch
              %119 = sbr.rel (0) target = $region32
            $region31: #{kdgene_forward.3} parent=27 // pred_region
              loop: start=0, step=1, limit=1
              $region33: #{kdgene_forward.3} parent=31 // loop_pre_header
                _
              $region34: #{kdgene_forward.3} parent=31 // loop_header
                %s121 = sphi 0, %s125
                %p122 = scmp.ge.s32.totalorder %s121, 1
                %s126 = sphi %s115, %s115
                %s127 = sphi %s112, %s112
              $region35: #{kdgene_forward.3} parent=31 // loop_header_branch
                %124 = sbr.rel (%p122) target = $region39
              $region36: #{kdgene_forward.3} parent=31 // loop_body
                %v128 = vld [vmem:[%s126] sm:$0xff]
                %129 = vst [vmem:[%s127] sm:$0xff] %v128
                %v130 = vld [vmem:[%s126 + $0x8] sm:$0xff]
                %131 = vst [vmem:[%s127 + $0x8] sm:$0xff] %v130
                %v132 = vld [vmem:[%s126 + $0x40] sm:$0xff]
                %133 = vst [vmem:[%s127 + $0x10] sm:$0xff] %v132
                %v134 = vld [vmem:[%s126 + $0x48] sm:$0xff]
                %135 = vst [vmem:[%s127 + $0x18] sm:$0xff] %v134
                %v136 = vld [vmem:[%s126 + $0x80] sm:$0xff]
                %137 = vst [vmem:[%s127 + $0x20] sm:$0xff] %v136
                %v138 = vld [vmem:[%s126 + $0x88] sm:$0xff]
                %139 = vst [vmem:[%s127 + $0x28] sm:$0xff] %v138
                %v140 = vld [vmem:[%s126 + $0xc0] sm:$0xff]
                %141 = vst [vmem:[%s127 + $0x30] sm:$0xff] %v140
                %v142 = vld [vmem:[%s126 + $0xc8] sm:$0xff]
                %143 = vst [vmem:[%s127 + $0x38] sm:$0xff] %v142
                %v144 = vld [vmem:[%s126 + $0x100] sm:$0xff]
                %145 = vst [vmem:[%s127 + $0x40] sm:$0xff] %v144
                %v146 = vld [vmem:[%s126 + $0x108] sm:$0xff]
                %147 = vst [vmem:[%s127 + $0x48] sm:$0xff] %v146
                %v148 = vld [vmem:[%s126 + $0x140] sm:$0xff]
                %149 = vst [vmem:[%s127 + $0x50] sm:$0xff] %v148
                %v150 = vld [vmem:[%s126 + $0x148] sm:$0xff]
                %151 = vst [vmem:[%s127 + $0x58] sm:$0xff] %v150
                %v152 = vld [vmem:[%s126 + $0x180] sm:$0xff]
                %153 = vst [vmem:[%s127 + $0x60] sm:$0xff] %v152
                %v154 = vld [vmem:[%s126 + $0x188] sm:$0xff]
                %155 = vst [vmem:[%s127 + $0x68] sm:$0xff] %v154
                %v156 = vld [vmem:[%s126 + $0x1c0] sm:$0xff]
                %157 = vst [vmem:[%s127 + $0x70] sm:$0xff] %v156
                %v158 = vld [vmem:[%s126 + $0x1c8] sm:$0xff]
                %159 = vst [vmem:[%s127 + $0x78] sm:$0xff] %v158
                %v160 = vld [vmem:[%s126 + $0x200] sm:$0xff]
                %161 = vst [vmem:[%s127 + $0x80] sm:$0xff] %v160
                %v162 = vld [vmem:[%s126 + $0x208] sm:$0xff]
                %163 = vst [vmem:[%s127 + $0x88] sm:$0xff] %v162
                %v164 = vld [vmem:[%s126 + $0x240] sm:$0xff]
                %165 = vst [vmem:[%s127 + $0x90] sm:$0xff] %v164
                %v166 = vld [vmem:[%s126 + $0x248] sm:$0xff]
                %167 = vst [vmem:[%s127 + $0x98] sm:$0xff] %v166
                %v168 = vld [vmem:[%s126 + $0x280] sm:$0xff]
                %169 = vst [vmem:[%s127 + $0xa0] sm:$0xff] %v168
                %v170 = vld [vmem:[%s126 + $0x288] sm:$0xff]
                %171 = vst [vmem:[%s127 + $0xa8] sm:$0xff] %v170
                %v172 = vld [vmem:[%s126 + $0x2c0] sm:$0xff]
                %173 = vst [vmem:[%s127 + $0xb0] sm:$0xff] %v172
                %v174 = vld [vmem:[%s126 + $0x2c8] sm:$0xff]
                %175 = vst [vmem:[%s127 + $0xb8] sm:$0xff] %v174
                %v176 = vld [vmem:[%s126 + $0x300] sm:$0xff]
                %177 = vst [vmem:[%s127 + $0xc0] sm:$0xff] %v176
                %v178 = vld [vmem:[%s126 + $0x308] sm:$0xff]
                %179 = vst [vmem:[%s127 + $0xc8] sm:$0xff] %v178
                %v180 = vld [vmem:[%s126 + $0x340] sm:$0xff]
                %181 = vst [vmem:[%s127 + $0xd0] sm:$0xff] %v180
                %v182 = vld [vmem:[%s126 + $0x348] sm:$0xff]
                %183 = vst [vmem:[%s127 + $0xd8] sm:$0xff] %v182
                %v184 = vld [vmem:[%s126 + $0x380] sm:$0xff]
                %185 = vst [vmem:[%s127 + $0xe0] sm:$0xff] %v184
                %v186 = vld [vmem:[%s126 + $0x388] sm:$0xff]
                %187 = vst [vmem:[%s127 + $0xe8] sm:$0xff] %v186
                %v188 = vld [vmem:[%s126 + $0x3c0] sm:$0xff]
                %189 = vst [vmem:[%s127 + $0xf0] sm:$0xff] %v188
                %v190 = vld [vmem:[%s126 + $0x3c8] sm:$0xff]
                %191 = vst [vmem:[%s127 + $0xf8] sm:$0xff] %v190
              $region37: #{kdgene_forward.3} parent=31 // loop_footer
                %s125 = sadd.s32 1, %s121
              $region38: #{kdgene_forward.3} parent=31 // loop_footer_branch
                %120 = sbr.rel target = $region34
              $region39: #{kdgene_forward.3} parent=31 // loop_exit
                _
            $region32: #{kdgene_forward.3} parent=27 // pred_fallthru
              _
            // Predicated region
            $region40: #{kdgene_forward.3} parent=27 // pred_check
              _
            $region41: #{kdgene_forward.3} parent=27 // pred_check_branch
              %193 = sbr.rel target = $region43
            $region42: #{kdgene_forward.3} parent=27 // pred_region
              _
            $region43: #{kdgene_forward.3} parent=27 // pred_fallthru
              _
          $region28: #{kdgene_forward.3} parent=23 // pred_fallthru
            _
          %194 = vnop
        $region24: #{kdgene_forward.3} parent=19 // pred_fallthru
          _
      $region20: #{kdgene_forward.3} parent=5 // pred_fallthru
        _
      %p195 = scmp.le.s32.totalorder 1, %s11
      %p196 = scmp.lt.s32.totalorder %s11, 5
      %p197 = pnand %p195, %p196
      %p198 = pneg %p197
      // Predicated region
      $region44: #{kdgene_forward.3} parent=5 // pred_check
        _
      $region45: #{kdgene_forward.3} parent=5 // pred_check_branch
        %200 = sbr.rel (%p197) target = $region47
      $region46: #{kdgene_forward.3} parent=5 // pred_region
        %s201 = ssub.s32 %s11, 1
        %s202 = sand.u32 %s45, 1
        %s203 = sand.u32 %s45, 1
        %s204 = smul.addr %s203, 256
        %s205 = scalar_lea.vmem [#allocation2], %s204
        // Predicated region
        $region48: #{kdgene_forward.3} parent=46 // pred_check
          %p206 = pneg %p58
        $region49: #{kdgene_forward.3} parent=46 // pred_check_branch
          %208 = sbr.rel (%p206) target = $region51
        $region50: #{kdgene_forward.3} parent=46 // pred_region
          _
        $region51: #{kdgene_forward.3} parent=46 // pred_fallthru
          _
        %p209 = pneg %p32
        %p210 = pneg %p29
        %s211 = sand.u32 %s45, 1
        %s212 = sand.u32 %s45, 1
        %s213 = smul.addr %s212, 256
        %s214 = scalar_lea.vmem [#allocation2], %s213
        %p215 = pneg %p58
        %p216 = pneg %p55
        %p217 = pneg %p84
        %p218 = pneg %p81
        %s219 = sand.u32 %s71, 1
        %s220 = scalar_lea.sflag [#allocation4], %s219
        %s221 = sand.u32 %s71, 1
        %s222 = smul.addr %s221, 16
        %s223 = scalar_lea.vmem [#allocation3], %s222
        %s224 = smul.u32 2, %s16
        %s225 = smul.u32 2, %s16
        %v226 = vld [vmem:[%s0] sm:$0xff]
        %v227 = vld [vmem:[%s205] sm:$0xff]
        %v228 = vld [vmem:[%s205 + $0x8] sm:$0xff]
        %v229 = vld [vmem:[%s205 + $0x10] sm:$0xff]
        %v230 = vld [vmem:[%s205 + $0x18] sm:$0xff]
        %v231 = vld [vmem:[%s205 + $0x20] sm:$0xff]
        %v232 = vld [vmem:[%s205 + $0x28] sm:$0xff]
        %v233 = vld [vmem:[%s205 + $0x30] sm:$0xff]
        %v234 = vld [vmem:[%s205 + $0x38] sm:$0xff]
        %v235 = vld [vmem:[%s205 + $0x40] sm:$0xff]
        %v236 = vld [vmem:[%s205 + $0x48] sm:$0xff]
        %v237 = vld [vmem:[%s205 + $0x50] sm:$0xff]
        %v238 = vld [vmem:[%s205 + $0x58] sm:$0xff]
        %v239 = vld [vmem:[%s205 + $0x60] sm:$0xff]
        %v240 = vld [vmem:[%s205 + $0x68] sm:$0xff]
        %v241 = vld [vmem:[%s205 + $0x70] sm:$0xff]
        %v242 = vld [vmem:[%s205 + $0x78] sm:$0xff]
        %v243 = vld [vmem:[%s205 + $0x80] sm:$0xff]
        %v244 = vld [vmem:[%s205 + $0x88] sm:$0xff]
        %v245 = vld [vmem:[%s205 + $0x90] sm:$0xff]
        %v246 = vld [vmem:[%s205 + $0x98] sm:$0xff]
        %v247 = vld [vmem:[%s205 + $0xa0] sm:$0xff]
        %v248 = vld [vmem:[%s205 + $0xa8] sm:$0xff]
        %v249 = vld [vmem:[%s205 + $0xb0] sm:$0xff]
        %v250 = vld [vmem:[%s205 + $0xb8] sm:$0xff]
        %v251 = vld [vmem:[%s205 + $0xc0] sm:$0xff]
        %v252 = vld [vmem:[%s205 + $0xc8] sm:$0xff]
        %v253 = vld [vmem:[%s205 + $0xd0] sm:$0xff]
        %v254 = vld [vmem:[%s205 + $0xd8] sm:$0xff]
        %v255 = vld [vmem:[%s205 + $0xe0] sm:$0xff]
        %v256 = vld [vmem:[%s205 + $0xe8] sm:$0xff]
        %v257 = vld [vmem:[%s205 + $0xf0] sm:$0xff]
        %v258 = vld [vmem:[%s205 + $0xf8] sm:$0xff]
        %259 = vmatprep.subr.mxu0 %v258
        %260 = vmatpush1.msra.mxu0 %v257
        %261 = vmatprep.subr.mxu0 %v256
        %262 = vmatpush1.msra.mxu0 %v255
        %263 = vmatprep.subr.mxu0 %v254
        %264 = vmatpush1.msra.mxu0 %v253
        %265 = vmatprep.subr.mxu0 %v252
        %266 = vmatpush1.msra.mxu0 %v251
        %267 = vmatprep.subr.mxu0 %v250
        %268 = vmatpush1.msra.mxu0 %v249
        %269 = vmatprep.subr.mxu0 %v248
        %270 = vmatpush1.msra.mxu0 %v247
        %271 = vmatprep.subr.mxu0 %v246
        %272 = vmatpush1.msra.mxu0 %v245
        %273 = vmatprep.subr.mxu0 %v244
        %274 = vmatpush1.msra.mxu0 %v243
        %275 = vmatprep.subr.mxu0 %v242
        %276 = vmatpush1.msra.mxu0 %v241
        %277 = vmatprep.subr.mxu0 %v240
        %278 = vmatpush1.msra.mxu0 %v239
        %279 = vmatprep.subr.mxu0 %v238
        %280 = vmatpush1.msra.mxu0 %v237
        %281 = vmatprep.subr.mxu0 %v236
        %282 = vmatpush1.msra.mxu0 %v235
        %283 = vmatprep.subr.mxu0 %v234
        %284 = vmatpush1.msra.mxu0 %v233
        %285 = vmatprep.subr.mxu0 %v232
        %286 = vmatpush1.msra.mxu0 %v231
        %287 = vmatprep.subr.mxu0 %v230
        %288 = vmatpush1.msra.mxu0 %v229
        %289 = vmatprep.subr.mxu0 %v228
        %290 = vmatpush1.msra.mxu0 %v227
        %291 = vmatprep.subr.mxu0 0.0
        %292 = vmatpush2.msra.mxu0 0.0
        %293 = vmatprep.subr.mxu0 0.0
        %294 = vmatpush2.msra.mxu0 0.0
        %295 = vmatprep.subr.mxu0 0.0
        %296 = vmatpush2.msra.mxu0 0.0
        %297 = vmatprep.subr.mxu0 0.0
        %298 = vmatpush2.msra.mxu0 0.0
        %299 = vmatprep.subr.mxu0 0.0
        %300 = vmatpush2.msra.mxu0 0.0
        %301 = vmatprep.subr.mxu0 0.0
        %302 = vmatpush2.msra.mxu0 0.0
        %303 = vmatprep.subr.mxu0 0.0
        %304 = vmatpush2.msra.mxu0 0.0
        %305 = vmatprep.subr.mxu0 0.0
        %306 = vmatpush2.msra.mxu0 0.0
        %307 = vmatprep.subr.mxu0 0.0
        %308 = vmatpush2.msra.mxu0 0.0
        %309 = vmatprep.subr.mxu0 0.0
        %310 = vmatpush2.msra.mxu0 0.0
        %311 = vmatprep.subr.mxu0 0.0
        %312 = vmatpush2.msra.mxu0 0.0
        %313 = vmatprep.subr.mxu0 0.0
        %314 = vmatpush2.msra.mxu0 0.0
        %315 = vmatprep.subr.mxu0 0.0
        %316 = vmatpush2.msra.mxu0 0.0
        %317 = vmatprep.subr.mxu0 0.0
        %318 = vmatpush2.msra.mxu0 0.0
        %319 = vmatprep.subr.mxu0 0.0
        %320 = vmatpush2.msra.mxu0 0.0
        %321 = vmatprep.subr.mxu0 0.0
        %322 = vmatpush2.msra.mxu0 0.0
        %323 = vmatprep.mubr.f32.mxu0 0.0
        %324 = vmatmul.mubr.f32.gmra.mxu0 %v226
        %v325 = vpop.f32.mrf.mxu0
        %v326 = vadd.f32 0.0, %v325
        %v327 = vpop.f32.mrf.mxu0
        %v328 = vadd.f32 0.0, %v327
        %329 = vdwg.mxu0
        %330 = vst [vmem:[%s223] sm:$0xff] %v326
        %331 = vst [vmem:[%s223 + $0x8] sm:$0xff] %v328
        %s332 = sand.u32 %s71, 1
        %s333 = scalar_lea.sflag [#allocation4], %s332
        %s334 = sand.u32 %s71, 1
        %s335 = smul.addr %s334, 16
        %s336 = scalar_lea.vmem [#allocation3], %s335
        // Predicated region
        $region52: #{kdgene_forward.3} parent=46 // pred_check
          %p337 = pneg %p81
        $region53: #{kdgene_forward.3} parent=46 // pred_check_branch
          %339 = sbr.rel (%p337) target = $region55
        $region54: #{kdgene_forward.3} parent=46 // pred_region
          %s340 = smul.u32 2, %s16
          %s342 = ssub.s32 256, 256
          %343 = vsyncadd %s333, %s342
          %s344 = smul.addr %s340, 128
          %s345 = scalar_lea.hbm %s2, %s344
          %s347 = sshll.u32 %s336, 4
          %s348 = int_to_ptr.vmem [resolvable:$true] %s347
          %350 = dma.vmem_to_hbm [thread:$0]  %s348, 256, %s345, %s333
        $region55: #{kdgene_forward.3} parent=46 // pred_fallthru
          _
      $region47: #{kdgene_forward.3} parent=5 // pred_fallthru
        _
      %p351 = scmp.le.s32.totalorder 2, %s11
      // Predicated region
      $region56: #{kdgene_forward.3} parent=5 // pred_check
        %p352 = pneg %p351
      $region57: #{kdgene_forward.3} parent=5 // pred_check_branch
        %354 = sbr.rel (%p352) target = $region59
      $region58: #{kdgene_forward.3} parent=5 // pred_region
        %s355 = ssub.s32 %s11, 2
        // Predicated region
        $region60: #{kdgene_forward.3} parent=58 // pred_check
          %p356 = pneg %p87
        $region61: #{kdgene_forward.3} parent=58 // pred_check_branch
          %358 = sbr.rel (%p356) target = $region63
        $region62: #{kdgene_forward.3} parent=58 // pred_region
          %s359 = sand.u32 %s72, 1
          %s360 = scalar_lea.sflag [#allocation4], %s359
          %s361 = sand.u32 %s72, 1
          %s362 = smul.addr %s361, 16
          %s363 = scalar_lea.vmem [#allocation3], %s362
          %364 = dma.done %s360, 256
        $region63: #{kdgene_forward.3} parent=58 // pred_fallthru
          _
      $region59: #{kdgene_forward.3} parent=5 // pred_fallthru
        _
    $region6: #{kdgene_forward.3} parent=1 // loop_footer
      %s15 = sadd.s32 1, %s11
    $region7: #{kdgene_forward.3} parent=1 // loop_footer_branch
      %10 = sbr.rel target = $region3
    $region8: #{kdgene_forward.3} parent=1 // loop_exit
      _
    %365 = vsyncpa [#allocation4], 1
    %s366 = scalar_lea.sflag [#allocation4], 1
    %367 = vsyncpa %s366, 1

// kernel: kdgene_forward.2
$region0: #{kdgene_forward.2}
  #allocation0 [shape = 'u32[]', space=smem, size = 0x4, offset = 0x4, fixed_abs, tag = 'smem constant byte address 0x4 - core index']
  #allocation1 [shape = 'u32[144,128]{1,0:T(1,128)}', space=vmem, size = 0x12000, scoped, tag = 'internal scratch']
  %s0 = inlined_call_operand.vmem [shape: f32[8,256], index: 0, kind: input, shape index: {}]
  %s1 = inlined_call_operand.vmem [shape: f32[8,128], index: 1, kind: input, shape index: {}]
  %s2 = inlined_call_operand.hbm [shape: f32[256,384], index: 2, kind: input, shape index: {}]
  %s3 = inlined_call_operand.hbm [shape: f32[1,384], index: 3, kind: input, shape index: {}]
  %s4 = inlined_call_operand.vmem [shape: f32[8,128], index: 4, kind: output, shape index: {}]
  %s5 = sld [smem:[#allocation0]]
  $region34: #{kdgene_forward.2} parent=0
    _
  %s7 = ssub.s32 1, %s5
  %s8 = scalar_select 0, %s7, %s5
  $region1: #{kdgene_forward.2} parent=0
    #allocation2 [shape = 'u8[393216]{0}', space=vmem, size = 0x60000, scoped, tag = 'input window, operand 2, single buffered']
    #allocation3 [shape = 's32[1]{0}', space=sflag, size = 0x4, scoped, tag = 'scoped memory for kdgene_forward.2']
    #allocation4 [shape = 'u8[1536]{0}', space=vmem, size = 0x800, scoped, tag = 'input window, operand 3, single buffered']
    #allocation5 [shape = 's32[1]{0}', space=sflag, size = 0x4, scoped, tag = 'scoped memory for kdgene_forward.2']
    %9 = vsyncpa [#allocation3], 0
    %10 = vsyncpa [#allocation5], 0
    // Predicated region
    $region2: #{kdgene_forward.2} parent=1 // pred_check
      _
    $region3: #{kdgene_forward.2} parent=1 // pred_check_branch
      %12 = sbr.rel (0) target = $region5
    $region4: #{kdgene_forward.2} parent=1 // pred_region
      _
    $region5: #{kdgene_forward.2} parent=1 // pred_fallthru
      _
    // Predicated region
    $region6: #{kdgene_forward.2} parent=1 // pred_check
      _
    $region7: #{kdgene_forward.2} parent=1 // pred_check_branch
      %14 = sbr.rel (0) target = $region9
    $region8: #{kdgene_forward.2} parent=1 // pred_region
      _
    $region9: #{kdgene_forward.2} parent=1 // pred_fallthru
      _
    // Predicated region
    $region10: #{kdgene_forward.2} parent=1 // pred_check
      _
    $region11: #{kdgene_forward.2} parent=1 // pred_check_branch
      %16 = sbr.rel (0) target = $region13
    $region12: #{kdgene_forward.2} parent=1 // pred_region
      %s18 = ssub.s32 12288, 12288
      %19 = vsyncadd [#allocation3], %s18
      %s20 = sshll.u32 [#allocation2], 4
      %s21 = int_to_ptr.vmem [resolvable:$true] %s20
      %26 = dma.hbm_to_vmem [thread:$0]  %s2, 12288, %s21, [#allocation3], 384, 384, 24
    $region13: #{kdgene_forward.2} parent=1 // pred_fallthru
      _
    // Predicated region
    $region14: #{kdgene_forward.2} parent=1 // pred_check
      _
    $region15: #{kdgene_forward.2} parent=1 // pred_check_branch
      %28 = sbr.rel (0) target = $region17
    $region16: #{kdgene_forward.2} parent=1 // pred_region
      %s30 = ssub.s32 48, 48
      %31 = vsyncadd [#allocation5], %s30
      %s33 = sshll.u32 [#allocation4], 4
      %s34 = int_to_ptr.vmem [resolvable:$true] %s33
      %36 = dma.hbm_to_vmem [thread:$0]  %s3, 48, %s34, [#allocation5]
    $region17: #{kdgene_forward.2} parent=1 // pred_fallthru
      _
    // Predicated region
    $region18: #{kdgene_forward.2} parent=1 // pred_check
      _
    $region19: #{kdgene_forward.2} parent=1 // pred_check_branch
      %38 = sbr.rel (0) target = $region21
    $region20: #{kdgene_forward.2} parent=1 // pred_region
      %39 = dma.done [#allocation3], 12288
    $region21: #{kdgene_forward.2} parent=1 // pred_fallthru
      _
    // Predicated region
    $region22: #{kdgene_forward.2} parent=1 // pred_check
      _
    $region23: #{kdgene_forward.2} parent=1 // pred_check_branch
      %41 = sbr.rel (0) target = $region25
    $region24: #{kdgene_forward.2} parent=1 // pred_region
      %42 = dma.done [#allocation5], 48
    $region25: #{kdgene_forward.2} parent=1 // pred_fallthru
      _
    %v43 = vld [vmem:[%s0] sm:$0xff]
    %v44 = vld [vmem:[%s0 + $0x8] sm:$0xff]
    %v45 = vld [vmem:[#allocation2] sm:$0xff]
    %v46 = vld [vmem:[#allocation2 + $0x8] sm:$0xff]
    %v47 = vld [vmem:[#allocation2 + $0x10] sm:$0xff]
    %v48 = vld [vmem:[#allocation2 + $0x18] sm:$0xff]
    %v49 = vld [vmem:[#allocation2 + $0x20] sm:$0xff]
    %v50 = vld [vmem:[#allocation2 + $0x28] sm:$0xff]
    %v51 = vld [vmem:[#allocation2 + $0x30] sm:$0xff]
    %v52 = vld [vmem:[#allocation2 + $0x38] sm:$0xff]
    %v53 = vld [vmem:[#allocation2 + $0x40] sm:$0xff]
    %v54 = vld [vmem:[#allocation2 + $0x48] sm:$0xff]
    %v55 = vld [vmem:[#allocation2 + $0x50] sm:$0xff]
    %v56 = vld [vmem:[#allocation2 + $0x58] sm:$0xff]
    %v57 = vld [vmem:[#allocation2 + $0x60] sm:$0xff]
    %v58 = vld [vmem:[#allocation2 + $0x68] sm:$0xff]
    %v59 = vld [vmem:[#allocation2 + $0x70] sm:$0xff]
    %v60 = vld [vmem:[#allocation2 + $0x78] sm:$0xff]
    %v61 = vld [vmem:[#allocation2 + $0x80] sm:$0xff]
    %v62 = vld [vmem:[#allocation2 + $0x88] sm:$0xff]
    %v63 = vld [vmem:[#allocation2 + $0x90] sm:$0xff]
    %v64 = vld [vmem:[#allocation2 + $0x98] sm:$0xff]
    %v65 = vld [vmem:[#allocation2 + $0xa0] sm:$0xff]
    %v66 = vld [vmem:[#allocation2 + $0xa8] sm:$0xff]
    %v67 = vld [vmem:[#allocation2 + $0xb0] sm:$0xff]
    %v68 = vld [vmem:[#allocation2 + $0xb8] sm:$0xff]
    %v69 = vld [vmem:[#allocation2 + $0xc0] sm:$0xff]
    %v70 = vld [vmem:[#allocation2 + $0xc8] sm:$0xff]
    %v71 = vld [vmem:[#allocation2 + $0xd0] sm:$0xff]
    %v72 = vld [vmem:[#allocation2 + $0xd8] sm:$0xff]
    %v73 = vld [vmem:[#allocation2 + $0xe0] sm:$0xff]
    %v74 = vld [vmem:[#allocation2 + $0xe8] sm:$0xff]
    %v75 = vld [vmem:[#allocation2 + $0xf0] sm:$0xff]
    %v76 = vld [vmem:[#allocation2 + $0xf8] sm:$0xff]
    %v77 = vld [vmem:[#allocation2 + $0x100] sm:$0xff]
    %v78 = vld [vmem:[#allocation2 + $0x108] sm:$0xff]
    %v79 = vld [vmem:[#allocation2 + $0x110] sm:$0xff]
    %v80 = vld [vmem:[#allocation2 + $0x118] sm:$0xff]
    %v81 = vld [vmem:[#allocation2 + $0x120] sm:$0xff]
    %v82 = vld [vmem:[#allocation2 + $0x128] sm:$0xff]
    %v83 = vld [vmem:[#allocation2 + $0x130] sm:$0xff]
    %v84 = vld [vmem:[#allocation2 + $0x138] sm:$0xff]
    %v85 = vld [vmem:[#allocation2 + $0x140] sm:$0xff]
    %v86 = vld [vmem:[#allocation2 + $0x148] sm:$0xff]
    %v87 = vld [vmem:[#allocation2 + $0x150] sm:$0xff]
    %v88 = vld [vmem:[#allocation2 + $0x158] sm:$0xff]
    %v89 = vld [vmem:[#allocation2 + $0x160] sm:$0xff]
    %v90 = vld [vmem:[#allocation2 + $0x168] sm:$0xff]
    %v91 = vld [vmem:[#allocation2 + $0x170] sm:$0xff]
    %v92 = vld [vmem:[#allocation2 + $0x178] sm:$0xff]
    %v93 = vld [vmem:[#allocation2 + $0x180] sm:$0xff]
    %v94 = vld [vmem:[#allocation2 + $0x188] sm:$0xff]
    %v95 = vld [vmem:[#allocation2 + $0x190] sm:$0xff]
    %v96 = vld [vmem:[#allocation2 + $0x198] sm:$0xff]
    %v97 = vld [vmem:[#allocation2 + $0x1a0] sm:$0xff]
    %v98 = vld [vmem:[#allocation2 + $0x1a8] sm:$0xff]
    %v99 = vld [vmem:[#allocation2 + $0x1b0] sm:$0xff]
    %v100 = vld [vmem:[#allocation2 + $0x1b8] sm:$0xff]
    %v101 = vld [vmem:[#allocation2 + $0x1c0] sm:$0xff]
    %v102 = vld [vmem:[#allocation2 + $0x1c8] sm:$0xff]
    %v103 = vld [vmem:[#allocation2 + $0x1d0] sm:$0xff]
    %v104 = vld [vmem:[#allocation2 + $0x1d8] sm:$0xff]
    %v105 = vld [vmem:[#allocation2 + $0x1e0] sm:$0xff]
    %v106 = vld [vmem:[#allocation2 + $0x1e8] sm:$0xff]
    %v107 = vld [vmem:[#allocation2 + $0x1f0] sm:$0xff]
    %v108 = vld [vmem:[#allocation2 + $0x1f8] sm:$0xff]
    %v109 = vld [vmem:[#allocation2 + $0x200] sm:$0xff]
    %v110 = vld [vmem:[#allocation2 + $0x208] sm:$0xff]
    %v111 = vld [vmem:[#allocation2 + $0x210] sm:$0xff]
    %v112 = vld [vmem:[#allocation2 + $0x218] sm:$0xff]
    %v113 = vld [vmem:[#allocation2 + $0x220] sm:$0xff]
    %v114 = vld [vmem:[#allocation2 + $0x228] sm:$0xff]
    %v115 = vld [vmem:[#allocation2 + $0x230] sm:$0xff]
    %v116 = vld [vmem:[#allocation2 + $0x238] sm:$0xff]
    %v117 = vld [vmem:[#allocation2 + $0x240] sm:$0xff]
    %v118 = vld [vmem:[#allocation2 + $0x248] sm:$0xff]
    %v119 = vld [vmem:[#allocation2 + $0x250] sm:$0xff]
    %v120 = vld [vmem:[#allocation2 + $0x258] sm:$0xff]
    %v121 = vld [vmem:[#allocation2 + $0x260] sm:$0xff]
    %v122 = vld [vmem:[#allocation2 + $0x268] sm:$0xff]
    %v123 = vld [vmem:[#allocation2 + $0x270] sm:$0xff]
    %v124 = vld [vmem:[#allocation2 + $0x278] sm:$0xff]
    %v125 = vld [vmem:[#allocation2 + $0x280] sm:$0xff]
    %v126 = vld [vmem:[#allocation2 + $0x288] sm:$0xff]
    %v127 = vld [vmem:[#allocation2 + $0x290] sm:$0xff]
    %v128 = vld [vmem:[#allocation2 + $0x298] sm:$0xff]
    %v129 = vld [vmem:[#allocation2 + $0x2a0] sm:$0xff]
    %v130 = vld [vmem:[#allocation2 + $0x2a8] sm:$0xff]
    %v131 = vld [vmem:[#allocation2 + $0x2b0] sm:$0xff]
    %v132 = vld [vmem:[#allocation2 + $0x2b8] sm:$0xff]
    %v133 = vld [vmem:[#allocation2 + $0x2c0] sm:$0xff]
    %v134 = vld [vmem:[#allocation2 + $0x2c8] sm:$0xff]
    %v135 = vld [vmem:[#allocation2 + $0x2d0] sm:$0xff]
    %v136 = vld [vmem:[#allocation2 + $0x2d8] sm:$0xff]
    %v137 = vld [vmem:[#allocation2 + $0x2e0] sm:$0xff]
    %v138 = vld [vmem:[#allocation2 + $0x2e8] sm:$0xff]
    %v139 = vld [vmem:[#allocation2 + $0x2f0] sm:$0xff]
    %v140 = vld [vmem:[#allocation2 + $0x2f8] sm:$0xff]
    %v141 = vld [vmem:[#allocation4] sm:$0x7]
    %v143 = vlaneseq
    %v144 = vshrl.u32 %v143, 7
    %v145 = vsub.s32 0, %v144
    %v146 = vrot.slane %v141, %v145
    %v147 = vlaneseq
    %v148 = vshrl.u32 %v147, 7
    %v149 = vsub.s32 1, %v148
    %v150 = vrot.slane %v141, %v149
    %v151 = vlaneseq
    %v152 = vshrl.u32 %v151, 7
    %v153 = vsub.s32 2, %v152
    %v154 = vrot.slane %v141, %v153
    %158 = vmatprep.subr.mxu0 %v91
    %159 = vmatpush1.msra.mxu0 %v90
    %160 = vmatprep.subr.mxu0 %v88
    %161 = vmatpush1.msra.mxu0 %v87
    %162 = vmatprep.subr.mxu0 %v85
    %163 = vmatpush1.msra.mxu0 %v84
    %164 = vmatprep.subr.mxu0 %v82
    %165 = vmatpush1.msra.mxu0 %v81
    %166 = vmatprep.subr.mxu0 %v79
    %167 = vmatpush1.msra.mxu0 %v78
    %168 = vmatprep.subr.mxu0 %v76
    %169 = vmatpush1.msra.mxu0 %v75
    %170 = vmatprep.subr.mxu0 %v73
    %171 = vmatpush1.msra.mxu0 %v72
    %172 = vmatprep.subr.mxu0 %v70
    %173 = vmatpush1.msra.mxu0 %v69
    %174 = vmatprep.subr.mxu0 %v67
    %175 = vmatpush1.msra.mxu0 %v66
    %176 = vmatprep.subr.mxu0 %v64
    %177 = vmatpush1.msra.mxu0 %v63
    %178 = vmatprep.subr.mxu0 %v61
    %179 = vmatpush1.msra.mxu0 %v60
    %180 = vmatprep.subr.mxu0 %v58
    %181 = vmatpush1.msra.mxu0 %v57
    %182 = vmatprep.subr.mxu0 %v55
    %183 = vmatpush1.msra.mxu0 %v54
    %184 = vmatprep.subr.mxu0 %v52
    %185 = vmatpush1.msra.mxu0 %v51
    %186 = vmatprep.subr.mxu0 %v49
    %187 = vmatpush1.msra.mxu0 %v48
    %188 = vmatprep.subr.mxu0 %v46
    %189 = vmatpush1.msra.mxu0 %v45
    %190 = vmatprep.subr.mxu0 %v139
    %191 = vmatpush2.msra.mxu0 %v138
    %192 = vmatprep.subr.mxu0 %v136
    %193 = vmatpush2.msra.mxu0 %v135
    %194 = vmatprep.subr.mxu0 %v133
    %195 = vmatpush2.msra.mxu0 %v132
    %196 = vmatprep.subr.mxu0 %v130
    %197 = vmatpush2.msra.mxu0 %v129
    %198 = vmatprep.subr.mxu0 %v127
    %199 = vmatpush2.msra.mxu0 %v126
    %200 = vmatprep.subr.mxu0 %v124
    %201 = vmatpush2.msra.mxu0 %v123
    %202 = vmatprep.subr.mxu0 %v121
    %203 = vmatpush2.msra.mxu0 %v120
    %204 = vmatprep.subr.mxu0 %v118
    %205 = vmatpush2.msra.mxu0 %v117
    %206 = vmatprep.subr.mxu0 %v115
    %207 = vmatpush2.msra.mxu0 %v114
    %208 = vmatprep.subr.mxu0 %v112
    %209 = vmatpush2.msra.mxu0 %v111
    %210 = vmatprep.subr.mxu0 %v109
    %211 = vmatpush2.msra.mxu0 %v108
    %212 = vmatprep.subr.mxu0 %v106
    %213 = vmatpush2.msra.mxu0 %v105
    %214 = vmatprep.subr.mxu0 %v103
    %215 = vmatpush2.msra.mxu0 %v102
    %216 = vmatprep.subr.mxu0 %v100
    %217 = vmatpush2.msra.mxu0 %v99
    %218 = vmatprep.subr.mxu0 %v97
    %219 = vmatpush2.msra.mxu0 %v96
    %220 = vmatprep.subr.mxu0 %v94
    %221 = vmatpush2.msra.mxu0 %v93
    %222 = vmatprep.mubr.f32.mxu0 %v44
    %223 = vmatmul.mubr.f32.gmra.mxu0 %v43
    %v224 = vpop.f32.mrf.mxu0
    %v225 = vadd.f32 %v146, %v224
    %v226 = vpop.f32.mrf.mxu0
    %v227 = vadd.f32 %v150, %v226
    %228 = vdwg.mxu0
    %229 = vmatprep.subr.mxu0 0.0
    %230 = vmatpush1.msra.mxu0 %v92
    %231 = vmatprep.subr.mxu0 0.0
    %232 = vmatpush1.msra.mxu0 %v89
    %233 = vmatprep.subr.mxu0 0.0
    %234 = vmatpush1.msra.mxu0 %v86
    %235 = vmatprep.subr.mxu0 0.0
    %236 = vmatpush1.msra.mxu0 %v83
    %237 = vmatprep.subr.mxu0 0.0
    %238 = vmatpush1.msra.mxu0 %v80
    %239 = vmatprep.subr.mxu0 0.0
    %240 = vmatpush1.msra.mxu0 %v77
    %241 = vmatprep.subr.mxu0 0.0
    %242 = vmatpush1.msra.mxu0 %v74
    %243 = vmatprep.subr.mxu0 0.0
    %244 = vmatpush1.msra.mxu0 %v71
    %245 = vmatprep.subr.mxu0 0.0
    %246 = vmatpush1.msra.mxu0 %v68
    %247 = vmatprep.subr.mxu0 0.0
    %248 = vmatpush1.msra.mxu0 %v65
    %249 = vmatprep.subr.mxu0 0.0
    %250 = vmatpush1.msra.mxu0 %v62
    %251 = vmatprep.subr.mxu0 0.0
    %252 = vmatpush1.msra.mxu0 %v59
    %253 = vmatprep.subr.mxu0 0.0
    %254 = vmatpush1.msra.mxu0 %v56
    %255 = vmatprep.subr.mxu0 0.0
    %256 = vmatpush1.msra.mxu0 %v53
    %257 = vmatprep.subr.mxu0 0.0
    %258 = vmatpush1.msra.mxu0 %v50
    %259 = vmatprep.subr.mxu0 0.0
    %260 = vmatpush1.msra.mxu0 %v47
    %261 = vmatprep.subr.mxu0 0.0
    %262 = vmatpush2.msra.mxu0 %v140
    %263 = vmatprep.subr.mxu0 0.0
    %264 = vmatpush2.msra.mxu0 %v137
    %265 = vmatprep.subr.mxu0 0.0
    %266 = vmatpush2.msra.mxu0 %v134
    %267 = vmatprep.subr.mxu0 0.0
    %268 = vmatpush2.msra.mxu0 %v131
    %269 = vmatprep.subr.mxu0 0.0
    %270 = vmatpush2.msra.mxu0 %v128
    %271 = vmatprep.subr.mxu0 0.0
    %272 = vmatpush2.msra.mxu0 %v125
    %273 = vmatprep.subr.mxu0 0.0
    %274 = vmatpush2.msra.mxu0 %v122
    %275 = vmatprep.subr.mxu0 0.0
    %276 = vmatpush2.msra.mxu0 %v119
    %277 = vmatprep.subr.mxu0 0.0
    %278 = vmatpush2.msra.mxu0 %v116
    %279 = vmatprep.subr.mxu0 0.0
    %280 = vmatpush2.msra.mxu0 %v113
    %281 = vmatprep.subr.mxu0 0.0
    %282 = vmatpush2.msra.mxu0 %v110
    %283 = vmatprep.subr.mxu0 0.0
    %284 = vmatpush2.msra.mxu0 %v107
    %285 = vmatprep.subr.mxu0 0.0
    %286 = vmatpush2.msra.mxu0 %v104
    %287 = vmatprep.subr.mxu0 0.0
    %288 = vmatpush2.msra.mxu0 %v101
    %289 = vmatprep.subr.mxu0 0.0
    %290 = vmatpush2.msra.mxu0 %v98
    %291 = vmatprep.subr.mxu0 0.0
    %292 = vmatpush2.msra.mxu0 %v95
    %293 = vmatprep.mubr.f32.mxu0 %v44
    %294 = vmatmul.mubr.f32.gmra.mxu0 %v43
    %v295 = vpop.f32.mrf.mxu0
    %v296 = vadd.f32 %v154, %v295
    %v297 = vpop.f32.mrf.mxu0
    %298 = vdwg.mxu0
    %v299 = vxor.u32 %v225, 2147483648
    %v300 = vmul.f32 %v299, 1.442695
    %v301 = vpow.pop %v300
    %v302 = vadd.f32 %v301, 1.0
    %v303 = vrcp.pop %v302
    %v304 = vmul.f32 1.0, %v303
    %v305 = vtanh.pop %v227
    %v306 = vxor.u32 %v296, 2147483648
    %v307 = vmul.f32 %v306, 1.442695
    %v308 = vpow.pop %v307
    %v309 = vadd.f32 %v308, 1.0
    %v310 = vrcp.pop %v309
    %v311 = vmul.f32 1.0, %v310
    %v312 = vmul.f32 %v304, %v305
    %v313 = vtanh.pop %v312
    %v314 = vmul.f32 %v311, %v313
    %v315 = vld [vmem:[%s1] sm:$0xff]
    %v316 = vmul.f32 %v315, %v314
    %317 = vst [vmem:[%s4] sm:$0xff] %v316
    // Predicated region
    $region26: #{kdgene_forward.2} parent=1 // pred_check
      _
    $region27: #{kdgene_forward.2} parent=1 // pred_check_branch
      %319 = sbr.rel (0) target = $region29
    $region28: #{kdgene_forward.2} parent=1 // pred_region
      _
    $region29: #{kdgene_forward.2} parent=1 // pred_fallthru
      _
    // Predicated region
    $region30: #{kdgene_forward.2} parent=1 // pred_check
      _
    $region31: #{kdgene_forward.2} parent=1 // pred_check_branch
      %321 = sbr.rel (0) target = $region33
    $region32: #{kdgene_forward.2} parent=1 // pred_region
      _
    $region33: #{kdgene_forward.2} parent=1 // pred_fallthru
      _
    %322 = vsyncpa [#allocation3], 1
    %323 = vsyncpa [#allocation5], 1

</llo_original>
